<compile_context>
chip_gen: v5e
topology: v5e:2x2
jax: 0.10.0
libtpu: 0.0.40
codegen_flags: <defaults>
</compile_context>

<pallas_src>
import math

import jax
import jax.numpy as jnp
from jax.experimental import pallas as pl
from jax.experimental.pallas import tpu as pltpu


def _pe_add_kernel(x_ref, pe_ref, o_ref):
    # x_ref : (TS, TB, D) input's native dtype
    # pe_ref: (TS, D)     float32  (tiny; broadcast over the batch sublanes)
    # o_ref : (TS, TB, D) float32
    o_ref[...] = x_ref[...].astype(jnp.float32) + pe_ref[...][:, None, :]


def make_pe_table(d_model: int = 6, max_len: int = 15) -> jnp.ndarray:
    """Deterministic sin/cos positional-encoding table, shape (max_len, d_model), float32."""
    position = jnp.arange(max_len, dtype=jnp.float32)[:, None]              # (max_len, 1)
    div_term = jnp.exp(
        jnp.arange(0, d_model, 2, dtype=jnp.float32) * (-math.log(10000.0) / d_model)
    )                                                                        # (d_model//2,)
    args = position * div_term                                               # (max_len, d_model//2)
    pe = jnp.zeros((max_len, d_model), dtype=jnp.float32)
    pe = pe.at[:, 0::2].set(jnp.sin(args))
    pe = pe.at[:, 1::2].set(jnp.cos(args))
    return pe


def _derive_tiles(S: int, B: int, D: int, x_itemsize: int, budget_bytes: int):
    """Pick (TS, TB) so 2 buffers x (x_tile + out_tile + pe_tile) stays near budget_bytes."""
    # Per (s, b) "row" of length D: x read (itemsize) + f32 out (4), double-buffered.
    per_row = D * (x_itemsize + 4) * 2
    max_rows = max(1, budget_bytes // per_row)          # (s, b) rows per block
    if max_rows >= B:
        TB = B
        TS = min(S, max(1, max_rows // B))
    else:
        TS = 1
        TB = min(B, max(8, (max_rows // 8) * 8))
    # Tiling constraints:
    #   x/out block (TS, TB, D): 2nd-last dim TB must be a multiple of 8 or == B.
    #   pe   block (TS, D)     : 2nd-last dim TS must be a multiple of 8 or == S.
    #   last dim D is always the full extent.
    if TB != B and TB % 8 != 0:
        TB = min(B, max(8, (TB // 8) * 8))
    if TS != S and TS % 8 != 0:
        TS = max(8, (TS // 8) * 8) if TS > 8 else min(S, 8)
    return TS, TB


def positional_encoding_forward(
    x: jnp.ndarray,
    pe: jnp.ndarray,
    *,
    vmem_budget_bytes: int = 16 * 1024 * 1024,
    min_pallas_bytes: int = 1 << 19,
) -> jnp.ndarray:
    """x: (S, B, D) any float dtype; pe: (max_len, D). Returns float32 (S, B, D)."""
    S, B, D = x.shape
    if S > pe.shape[0]:
        raise ValueError(f"sequence length {S} exceeds max_len {pe.shape[0]} of PE table")
    pe_s = pe[:S].astype(jnp.float32)                    # (S, D), tiny

    # Small-shape fast path: a fused XLA add beats custom-call dispatch +
    # per-step pipeline overhead when the whole problem is tiny.
    if S * B * D * 4 < min_pallas_bytes:
        return x.astype(jnp.float32) + pe_s[:, None, :]

    TS, TB = _derive_tiles(S, B, D, x.dtype.itemsize, vmem_budget_bytes)
    grid = (pl.cdiv(S, TS), pl.cdiv(B, TB))

    bytes_accessed = (
        S * B * D * x.dtype.itemsize   # x read
        + S * D * 4                    # pe read (tiny)
        + S * B * D * 4                # f32 out write
    )

    return pl.pallas_call(
        _pe_add_kernel,
        out_shape=jax.ShapeDtypeStruct((S, B, D), jnp.float32),
        grid=grid,
        in_specs=[
            pl.BlockSpec((TS, TB, D), lambda i, j: (i, j, 0)),
            pl.BlockSpec((TS, D), lambda i, j: (i, 0)),
        ],
        out_specs=pl.BlockSpec((TS, TB, D), lambda i, j: (i, j, 0)),
        compiler_params=pltpu.CompilerParams(
            dimension_semantics=("parallel", "parallel"),
            vmem_limit_bytes=32 * 1024 * 1024,
        ),
        cost_estimate=pl.CostEstimate(
            flops=S * B * D, transcendentals=0, bytes_accessed=bytes_accessed
        ),
    )(x, pe_s)


if __name__ == "__main__":
    d_model, max_len = 6, 15
    seq_len, batch = 8, 2

    key = jax.random.PRNGKey(0)
    x = jax.random.normal(key, (seq_len, batch, d_model), dtype=jnp.float32)
    pe = make_pe_table(d_model=d_model, max_len=max_len)
    ref = x.astype(jnp.float32) + pe[:seq_len, None, :]

    # 1) Pallas path forced at the module's real (tiny) shapes, float32 input.
    out = jax.block_until_ready(positional_encoding_forward(x, pe, min_pallas_bytes=0))
    assert out.shape == (seq_len, batch, d_model)
    assert out.dtype == jnp.float32
    assert jnp.allclose(out, ref, atol=1e-6), "float32 mismatch vs reference"

    # 2) Native bf16 input: cast to f32 happens inside the kernel only.
    x_bf16 = x.astype(jnp.bfloat16)
    out_bf = jax.block_until_ready(positional_encoding_forward(x_bf16, pe, min_pallas_bytes=0))
    ref_bf = x_bf16.astype(jnp.float32) + pe[:seq_len, None, :]
    assert out_bf.dtype == jnp.float32
    assert jnp.allclose(out_bf, ref_bf, atol=1e-6), "bf16-input mismatch vs reference"

    # 3) Tiny-shape fast path (default threshold) matches the reference too.
    out_fast = jax.block_until_ready(positional_encoding_forward(x, pe))
    assert jnp.allclose(out_fast, ref, atol=1e-6), "fast-path mismatch vs reference"

    # 4) Scaled-up shape with a small VMEM budget to exercise the multi-tile grid.
    d_big, s_big, b_big = 256, 64, 16
    pe_big = make_pe_table(d_model=d_big, max_len=s_big)
    x_big = jax.random.normal(jax.random.PRNGKey(1), (s_big, b_big, d_big), dtype=jnp.bfloat16)
    out_big = jax.block_until_ready(
        positional_encoding_forward(
            x_big, pe_big, min_pallas_bytes=0, vmem_budget_bytes=1 << 18
        )
    )
    ref_big = x_big.astype(jnp.float32) + pe_big[:s_big, None, :]
    assert jnp.allclose(out_big, ref_big, atol=1e-6), "tiled-grid mismatch vs reference"

    print("KERNEL_OK")
</pallas_src>

<mosaic_0001>
module attributes {stable_mosaic.version = 11 : i64} {
  func.func @_pe_add_kernel(%arg0: i32, %arg1: i32, %arg2: memref<8x2x6xf32, #tpu.memory_space<vmem>>, %arg3: memref<8x6xf32, #tpu.memory_space<vmem>>, %arg4: memref<8x2x6xf32, #tpu.memory_space<vmem>>) attributes {dimension_semantics = [#tpu.dimension_semantics<parallel>, #tpu.dimension_semantics<parallel>], iteration_bounds = array<i64: 1, 1>, scalar_prefetch = 0 : i64, scratch_operands = 0 : i64, tpu.core_type = #tpu.core_type<tc>, window_params = [{transform_indices = @transform_0, window_bounds = array<i64: 8, 2, 6>}, {transform_indices = @transform_1, window_bounds = array<i64: 8, 6>}, {transform_indices = @transform_2, window_bounds = array<i64: 8, 2, 6>}]} {
    %c0 = arith.constant 0 : index
    %c0_0 = arith.constant 0 : index
    %c0_1 = arith.constant 0 : index
    %0 = vector.load %arg2[%c0, %c0_0, %c0_1] : memref<8x2x6xf32, #tpu.memory_space<vmem>>, vector<8x2x6xf32>
    %c0_2 = arith.constant 0 : index
    %c0_3 = arith.constant 0 : index
    %1 = vector.load %arg3[%c0_2, %c0_3] : memref<8x6xf32, #tpu.memory_space<vmem>>, vector<8x6xf32>
    %2 = vector.shape_cast %1 : vector<8x6xf32> to vector<8x1x6xf32>
    %3 = vector.broadcast %2 : vector<8x1x6xf32> to vector<8x2x6xf32>
    %4 = arith.addf %0, %3 : vector<8x2x6xf32>
    %c0_4 = arith.constant 0 : index
    %c0_5 = arith.constant 0 : index
    %c0_6 = arith.constant 0 : index
    %5 = vector.load %arg4[%c0_4, %c0_5, %c0_6] : memref<8x2x6xf32, #tpu.memory_space<vmem>>, vector<8x2x6xf32>
    tpu.vector_store %arg4[%c0_4, %c0_5, %c0_6], %4 {strides = array<i32>} : memref<8x2x6xf32, #tpu.memory_space<vmem>>, vector<8x2x6xf32>,
    return
  }
  func.func @transform_0(%arg0: i32, %arg1: i32) -> (i32, i32, i32) {
    %c0_i32 = arith.constant 0 : i32
    %c0_i32_0 = arith.constant 0 : i32
    return %arg0, %arg1, %c0_i32 : i32, i32, i32
  }
  func.func @transform_1(%arg0: i32, %arg1: i32) -> (i32, i32) {
    %c0_i32 = arith.constant 0 : i32
    %c0_i32_0 = arith.constant 0 : i32
    return %arg0, %c0_i32 : i32, i32
  }
  func.func @transform_2(%arg0: i32, %arg1: i32) -> (i32, i32, i32) {
    %c0_i32 = arith.constant 0 : i32
    %c0_i32_0 = arith.constant 0 : i32
    return %arg0, %arg1, %c0_i32 : i32, i32, i32
  }
}

</mosaic_0001>

<llo_original>
// kernel: tpu_custom_call.1
$region0: #{tpu_custom_call.1}
  #allocation0 [shape = 'u32[]', space=smem, size = 0x4, offset = 0x4, fixed_abs, tag = 'smem constant byte address 0x4 - core index']
  #allocation1 [shape = 'u32[72,128]{1,0:T(1,128)}', space=vmem, size = 0x9000, scoped, tag = 'internal scratch']
  %s0 = inlined_call_operand.vmem [shape: f32[8,2,6], index: 0, kind: input, shape index: {}]
  %s1 = inlined_call_operand.vmem [shape: f32[8,6], index: 1, kind: input, shape index: {}]
  %s2 = inlined_call_operand.vmem [shape: f32[8,2,6], index: 2, kind: output, shape index: {}]
  %s3 = sld [smem:[#allocation0]]
  $region18: #{tpu_custom_call.1} parent=0
    _
  %s5 = ssub.s32 1, %s3
  %s6 = scalar_select 0, %s5, %s3
  // Predicated region
  $region2: #{tpu_custom_call.1} parent=0 // pred_check
    _
  $region3: #{tpu_custom_call.1} parent=0 // pred_check_branch
    %8 = sbr.rel (0) target = $region5
  $region4: #{tpu_custom_call.1} parent=0 // pred_region
    _
  $region5: #{tpu_custom_call.1} parent=0 // pred_fallthru
    _
  // Predicated region
  $region6: #{tpu_custom_call.1} parent=0 // pred_check
    _
  $region7: #{tpu_custom_call.1} parent=0 // pred_check_branch
    %10 = sbr.rel (0) target = $region9
  $region8: #{tpu_custom_call.1} parent=0 // pred_region
    _
  $region9: #{tpu_custom_call.1} parent=0 // pred_fallthru
    _
  %v11 = vld [vmem:[%s0] sm:$0x3]
  %v12 = vld [vmem:[%s0 + $0x2] sm:$0x3]
  %v13 = vld [vmem:[%s0 + $0x4] sm:$0x3]
  %v14 = vld [vmem:[%s0 + $0x6] sm:$0x3]
  %v15 = vld [vmem:[%s0 + $0x8] sm:$0x3]
  %v16 = vld [vmem:[%s0 + $0xa] sm:$0x3]
  %v17 = vld [vmem:[%s0 + $0xc] sm:$0x3]
  %v18 = vld [vmem:[%s0 + $0xe] sm:$0x3]
  %v19 = vld [vmem:[%s1] sm:$0xff]
  %v21 = vrot.slane %v19, 1
  %v22 = vrot.slane %v19, 2
  %v23 = vrot.slane %v19, 3
  %v24 = vrot.slane %v19, 4
  %v25 = vrot.slane %v19, 5
  %v26 = vrot.slane %v19, 6
  %v27 = vrot.slane %v19, 7
  %v28 = vperm.slane %v19, 0
  %v29 = vperm.slane %v21, 0
  %v30 = vperm.slane %v22, 0
  %v31 = vperm.slane %v23, 0
  %v32 = vperm.slane %v24, 0
  %v33 = vperm.slane %v25, 0
  %v34 = vperm.slane %v26, 0
  %v35 = vperm.slane %v27, 0
  %v44 = vadd.f32 %v11, %v28
  %v45 = vadd.f32 %v12, %v29
  %v46 = vadd.f32 %v13, %v30
  %v47 = vadd.f32 %v14, %v31
  %v48 = vadd.f32 %v15, %v32
  %v49 = vadd.f32 %v16, %v33
  %v50 = vadd.f32 %v17, %v34
  %v51 = vadd.f32 %v18, %v35
  %vm52 = vcmask 41984
  %53 = vst.msk [vmem:[%s2] sm:$0x3] %vm52, %v44
  %54 = vst.msk [vmem:[%s2 + $0x2] sm:$0x3] %vm52, %v45
  %55 = vst.msk [vmem:[%s2 + $0x4] sm:$0x3] %vm52, %v46
  %56 = vst.msk [vmem:[%s2 + $0x6] sm:$0x3] %vm52, %v47
  %57 = vst.msk [vmem:[%s2 + $0x8] sm:$0x3] %vm52, %v48
  %58 = vst.msk [vmem:[%s2 + $0xa] sm:$0x3] %vm52, %v49
  %59 = vst.msk [vmem:[%s2 + $0xc] sm:$0x3] %vm52, %v50
  %60 = vst.msk [vmem:[%s2 + $0xe] sm:$0x3] %vm52, %v51
  // Predicated region
  $region10: #{tpu_custom_call.1} parent=0 // pred_check
    _
  $region11: #{tpu_custom_call.1} parent=0 // pred_check_branch
    %62 = sbr.rel (0) target = $region13
  $region12: #{tpu_custom_call.1} parent=0 // pred_region
    _
  $region13: #{tpu_custom_call.1} parent=0 // pred_fallthru
    _
  // Predicated region
  $region14: #{tpu_custom_call.1} parent=0 // pred_check
    _
  $region15: #{tpu_custom_call.1} parent=0 // pred_check_branch
    %64 = sbr.rel (0) target = $region17
  $region16: #{tpu_custom_call.1} parent=0 // pred_region
    _
  $region17: #{tpu_custom_call.1} parent=0 // pred_fallthru
    _

</llo_original>
